<compile_context>
chip_gen: v7x
topology: tpu7x:2x2x1
jax: 0.10.0
libtpu: 0.0.40
codegen_flags: <defaults>
</compile_context>

<pallas_src>
import jax
import jax.numpy as jnp
from jax.experimental import pallas as pl
from jax.experimental.pallas import tpu as pltpu


def bottleneck_pallas(x_nhwc, params):
    w1, w2, w3, s1, b1, s2, b2, s3, b3 = params
    N, H, W, Cin = x_nhwc.shape
    C1 = w1.shape[-1]
    C2 = w2.shape[-1]
    Cout = w3.shape[-1]
    assert Cout == Cin, "identity residual requires Cin == planes*4"

    WCin, WC1, WC2, WCout = W * Cin, W * C1, W * C2, W * Cout
    f32, bf16 = jnp.float32, jnp.bfloat16

    # ---- wrapper-side layout prep (metadata reshape + one cast, no copies of
    # duplicated halo rows) --------------------------------------------------
    x_lane = x_nhwc.reshape(N, H, WCin).astype(bf16)     # lane-dense bf16 rows

    # Lift channel mixing to lane-dense space so the kernel never reshapes
    # across the lane dimension:
    #   * 1x1 convs  -> block-diagonal (W*Cin, W*Cout') matrices: kron(I_W, w)
    #   * 3x3 conv   -> per-vertical-tap banded matrices (W*C1, W*C2) encoding
    #     the horizontal taps + channel mix; W-edge zero padding falls out of
    #     the band clipping automatically.
    w1m = w1.reshape(Cin, C1).astype(f32)
    w3m = w3.reshape(C2, Cout).astype(f32)
    eye_w = jnp.eye(W, dtype=f32)
    w1b = jnp.kron(eye_w, w1m).astype(bf16)                         # (W*Cin, W*C1)
    w3b = jnp.kron(eye_w, w3m).astype(bf16)                         # (W*C2, W*Cout)
    w2b = jnp.stack([
        sum(jnp.kron(jnp.eye(W, W, k=1 - dw, dtype=f32),
                     w2[dh, dw].astype(f32)) for dw in range(3))
        for dh in range(3)]).astype(bf16)                           # (3, W*C1, W*C2)
    # Boundary-aware row shifts (row h-1 / h+1, zero at the image edge) as
    # tiny matmuls — no masked iota/where work per step.
    shiftb = jnp.stack([jnp.eye(H, k=-1, dtype=f32),                # -> row h-1
                        jnp.eye(H, k=1, dtype=f32)]).astype(bf16)   # -> row h+1
    # Folded-BN scale/bias, lane-replicated to the (rows, W*C) layout.
    vecs = [jnp.tile(v.astype(f32), W).reshape(1, -1)
            for v in (s1, b1, s2, b2, s3, b3)]

    def kernel(x_ref, w1_ref, sh_ref, w2_ref, w3_ref,
               s1_ref, b1_ref, s2_ref, b2_ref, s3_ref, b3_ref, o_ref):
        x = x_ref[0]                                 # (H, W*Cin) bf16, lane-dense
        # ---- conv1 (1x1) + bn1 + relu: operand IS the ref, zero reshapes ----
        o1 = jnp.dot(x, w1_ref[...], preferred_element_type=jnp.float32)
        o1 = jnp.maximum(o1 * s1_ref[...] + b1_ref[...], 0.0)
        o1b = o1.astype(jnp.bfloat16)                # (H, W*C1)

        # ---- conv2 (3x3, stride=1, pad=1): 3 accumulating matmuls (one per
        # vertical tap) into one f32 accumulator; no im2col gather / concat.
        dn = jnp.dot(sh_ref[0], o1b,                 # rows h-1 (zero at h=0)
                     preferred_element_type=jnp.float32).astype(jnp.bfloat16)
        up = jnp.dot(sh_ref[1], o1b,                 # rows h+1 (zero at h=H-1)
                     preferred_element_type=jnp.float32).astype(jnp.bfloat16)
        acc = jnp.dot(dn, w2_ref[0], preferred_element_type=jnp.float32)
        acc = acc + jnp.dot(o1b, w2_ref[1], preferred_element_type=jnp.float32)
        acc = acc + jnp.dot(up, w2_ref[2], preferred_element_type=jnp.float32)
        o2 = jnp.maximum(acc * s2_ref[...] + b2_ref[...], 0.0)

        # ---- conv3 (1x1) + bn3 ----
        o3 = jnp.dot(o2.astype(jnp.bfloat16), w3_ref[...],
                     preferred_element_type=jnp.float32)
        o3 = o3 * s3_ref[...] + b3_ref[...]

        # ---- identity residual + relu; bf16 lane-dense output (full-width
        # unmasked stores) ----
        out = jnp.maximum(o3 + x.astype(jnp.float32), 0.0)
        o_ref[0] = out.astype(o_ref.dtype)

    def full(arr):
        nd = arr.ndim
        return pl.BlockSpec(arr.shape, lambda i, _nd=nd: (0,) * _nd)

    grid_spec = pltpu.PrefetchScalarGridSpec(
        num_scalar_prefetch=0,
        grid=(N,),                                   # >=2 steps keeps both v7x TCs busy
        in_specs=[
            pl.BlockSpec((1, H, WCin), lambda i: (i, 0, 0)),
            full(w1b), full(shiftb), full(w2b), full(w3b),
            *[full(v) for v in vecs],
        ],
        out_specs=pl.BlockSpec((1, H, WCout), lambda i: (i, 0, 0)),
    )

    # VMEM budget derived from the actual per-step buffers (double-buffered
    # I/O blocks + resident weights) — tiny here, fits every generation.
    weight_bytes = (w1b.size + shiftb.size + w2b.size + w3b.size) * 2
    vec_bytes = sum(v.size * 4 for v in vecs)
    io_block_bytes = (H * WCin + H * WCout) * 2
    per_step_bytes = 2 * io_block_bytes + weight_bytes + vec_bytes
    vmem_limit = int(min(max(4 * per_step_bytes, 4 << 20), 32 << 20))

    flops = 2 * N * H * (WCin * WC1 + 2 * H * WC1 + 3 * WC1 * WC2 + WC2 * WCout)
    bytes_accessed = ((x_lane.size + N * H * WCout) * 2
                      + weight_bytes + vec_bytes)

    out = pl.pallas_call(
        kernel,
        out_shape=jax.ShapeDtypeStruct((N, H, WCout), bf16),
        grid_spec=grid_spec,
        compiler_params=pltpu.CompilerParams(
            dimension_semantics=("parallel",),
            vmem_limit_bytes=vmem_limit),
        cost_estimate=pl.CostEstimate(
            flops=flops, transcendentals=0, bytes_accessed=bytes_accessed),
    )(x_lane, w1b, shiftb, w2b, w3b, *vecs)

    return out.reshape(N, H, W, Cout)


def bottleneck_ref(x, w1, w2, w3, s1, b1, s2, b2, s3, b3):
    """Pure-JAX f32 reference (NHWC / HWIO convs)."""
    dn = ("NHWC", "HWIO", "NHWC")
    o = jax.lax.conv_general_dilated(x, w1, (1, 1), "VALID", dimension_numbers=dn)
    o = jnp.maximum(o * s1 + b1, 0.0)
    o = jax.lax.conv_general_dilated(o, w2, (1, 1), [(1, 1), (1, 1)],
                                     dimension_numbers=dn)
    o = jnp.maximum(o * s2 + b2, 0.0)
    o = jax.lax.conv_general_dilated(o, w3, (1, 1), "VALID", dimension_numbers=dn)
    o = o * s3 + b3
    return jnp.maximum(o + x, 0.0)


if __name__ == "__main__":
    key = jax.random.PRNGKey(0)
    inplanes, planes = 16, 4
    cfg = [inplanes, 4, 4]          # conv1: cfg[0]->cfg[1], conv2: cfg[1]->cfg[2]
    Cout = planes * 4               # conv3: cfg[2]->planes*4 (== inplanes)
    N, Hs, Ws = 2, 16, 16

    keys = jax.random.split(key, 16)
    # Conv weights stored HWIO (PyTorch OIHW weights transposed).
    w1 = 0.1 * jax.random.normal(keys[0], (1, 1, cfg[0], cfg[1]), jnp.float32)
    w2 = 0.1 * jax.random.normal(keys[1], (3, 3, cfg[1], cfg[2]), jnp.float32)
    w3 = 0.1 * jax.random.normal(keys[2], (1, 1, cfg[2], Cout), jnp.float32)

    def bn_fold(kg, kb, km, kv, c):
        gamma = 1.0 + 0.1 * jax.random.normal(kg, (c,), jnp.float32)
        beta = 0.1 * jax.random.normal(kb, (c,), jnp.float32)
        mean = 0.1 * jax.random.normal(km, (c,), jnp.float32)
        var = jnp.abs(jax.random.normal(kv, (c,), jnp.float32)) + 0.5
        eps = 1e-5                                  # PyTorch BatchNorm2d default
        scale = gamma / jnp.sqrt(var + eps)
        bias = beta - mean * scale
        return scale, bias

    s1, b1 = bn_fold(keys[3], keys[4], keys[5], keys[6], cfg[1])
    s2, b2 = bn_fold(keys[7], keys[8], keys[9], keys[10], cfg[2])
    s3, b3 = bn_fold(keys[11], keys[12], keys[13], keys[14], Cout)

    # PyTorch-style NCHW input -> NHWC for the TPU kernel.
    x_nchw = jax.random.normal(keys[15], (N, inplanes, Hs, Ws), jnp.float32)
    x_nhwc = jnp.transpose(x_nchw, (0, 2, 3, 1))

    params = (w1, w2, w3, s1, b1, s2, b2, s3, b3)
    out = bottleneck_pallas(x_nhwc, params)
    out = jax.block_until_ready(out)

    ref = bottleneck_ref(x_nhwc, *params)
    assert out.shape == (N, Hs, Ws, Cout)
    out_f32 = out.astype(jnp.float32)
    err = float(jnp.max(jnp.abs(out_f32 - ref)))
    # bf16 I/O + bf16 MXU operands (f32 accumulation) vs. f32 reference.
    assert jnp.allclose(out_f32, ref, atol=8e-2, rtol=5e-2), err
    print("KERNEL_OK")
</pallas_src>

<mosaic_0001>
module attributes {stable_mosaic.version = 11 : i64} {
  func.func @kernel(%arg0: i32, %arg1: memref<1x16x256xbf16, #tpu.memory_space<vmem>>, %arg2: memref<256x64xbf16, #tpu.memory_space<vmem>>, %arg3: memref<2x16x16xbf16, #tpu.memory_space<vmem>>, %arg4: memref<3x64x64xbf16, #tpu.memory_space<vmem>>, %arg5: memref<64x256xbf16, #tpu.memory_space<vmem>>, %arg6: memref<1x64xf32, #tpu.memory_space<vmem>>, %arg7: memref<1x64xf32, #tpu.memory_space<vmem>>, %arg8: memref<1x64xf32, #tpu.memory_space<vmem>>, %arg9: memref<1x64xf32, #tpu.memory_space<vmem>>, %arg10: memref<1x256xf32, #tpu.memory_space<vmem>>, %arg11: memref<1x256xf32, #tpu.memory_space<vmem>>, %arg12: memref<1x16x256xbf16, #tpu.memory_space<vmem>>) attributes {dimension_semantics = [#tpu.dimension_semantics<parallel>], iteration_bounds = array<i64: 2>, scalar_prefetch = 0 : i64, scratch_operands = 0 : i64, tpu.core_type = #tpu.core_type<tc>, window_params = [{transform_indices = @transform_0, window_bounds = array<i64: 1, 16, 256>}, {pipeline_mode = #tpu.pipeline_mode<synchronous>, transform_indices = @transform_1, window_bounds = array<i64: 256, 64>}, {pipeline_mode = #tpu.pipeline_mode<synchronous>, transform_indices = @transform_2, window_bounds = array<i64: 2, 16, 16>}, {pipeline_mode = #tpu.pipeline_mode<synchronous>, transform_indices = @transform_3, window_bounds = array<i64: 3, 64, 64>}, {pipeline_mode = #tpu.pipeline_mode<synchronous>, transform_indices = @transform_4, window_bounds = array<i64: 64, 256>}, {pipeline_mode = #tpu.pipeline_mode<synchronous>, transform_indices = @transform_5, window_bounds = array<i64: 1, 64>}, {pipeline_mode = #tpu.pipeline_mode<synchronous>, transform_indices = @transform_6, window_bounds = array<i64: 1, 64>}, {pipeline_mode = #tpu.pipeline_mode<synchronous>, transform_indices = @transform_7, window_bounds = array<i64: 1, 64>}, {pipeline_mode = #tpu.pipeline_mode<synchronous>, transform_indices = @transform_8, window_bounds = array<i64: 1, 64>}, {pipeline_mode = #tpu.pipeline_mode<synchronous>, transform_indices = @transform_9, window_bounds = array<i64: 1, 256>}, {pipeline_mode = #tpu.pipeline_mode<synchronous>, transform_indices = @transform_10, window_bounds = array<i64: 1, 256>}, {transform_indices = @transform_11, window_bounds = array<i64: 1, 16, 256>}]} {
    %c0 = arith.constant 0 : index
    %c0_0 = arith.constant 0 : index
    %c0_1 = arith.constant 0 : index
    %0 = vector.load %arg1[%c0, %c0_0, %c0_1] : memref<1x16x256xbf16, #tpu.memory_space<vmem>>, vector<1x16x256xbf16>
    %1 = vector.shape_cast %0 : vector<1x16x256xbf16> to vector<16x256xbf16>
    %c0_2 = arith.constant 0 : index
    %c0_3 = arith.constant 0 : index
    %2 = vector.load %arg2[%c0_2, %c0_3] : memref<256x64xbf16, #tpu.memory_space<vmem>>, vector<256x64xbf16>
    %cst = arith.constant dense<0.000000e+00> : vector<16x64xf32>
    %3 = tpu.matmul %1, %2, %cst {dimension_numbers = #tpu.dot_dimension_numbers<[1], [0], [0], [1], [0, 0, 1, 1], [], []>} : vector<16x256xbf16>, vector<256x64xbf16>, vector<16x64xf32> -> vector<16x64xf32>
    %c0_4 = arith.constant 0 : index
    %c0_5 = arith.constant 0 : index
    %4 = vector.load %arg6[%c0_4, %c0_5] : memref<1x64xf32, #tpu.memory_space<vmem>>, vector<1x64xf32>
    %5 = vector.broadcast %4 : vector<1x64xf32> to vector<16x64xf32>
    %6 = arith.mulf %3, %5 : vector<16x64xf32>
    %c0_6 = arith.constant 0 : index
    %c0_7 = arith.constant 0 : index
    %7 = vector.load %arg7[%c0_6, %c0_7] : memref<1x64xf32, #tpu.memory_space<vmem>>, vector<1x64xf32>
    %8 = vector.broadcast %7 : vector<1x64xf32> to vector<16x64xf32>
    %9 = arith.addf %6, %8 : vector<16x64xf32>
    %cst_8 = arith.constant 0.000000e+00 : f32
    %10 = vector.broadcast %cst_8 : f32 to vector<16x64xf32>
    %11 = arith.maximumf %9, %10 : vector<16x64xf32>
    %12 = arith.truncf %11 : vector<16x64xf32> to vector<16x64xbf16>
    %c0_9 = arith.constant 0 : index
    %c0_10 = arith.constant 0 : index
    %c0_11 = arith.constant 0 : index
    %13 = vector.load %arg3[%c0_9, %c0_10, %c0_11] : memref<2x16x16xbf16, #tpu.memory_space<vmem>>, vector<1x16x16xbf16>
    %14 = vector.shape_cast %13 : vector<1x16x16xbf16> to vector<16x16xbf16>
    %cst_12 = arith.constant dense<0.000000e+00> : vector<16x64xf32>
    %15 = tpu.matmul %14, %12, %cst_12 {dimension_numbers = #tpu.dot_dimension_numbers<[1], [0], [0], [1], [0, 0, 1, 1], [], []>} : vector<16x16xbf16>, vector<16x64xbf16>, vector<16x64xf32> -> vector<16x64xf32>
    %16 = arith.truncf %15 : vector<16x64xf32> to vector<16x64xbf16>
    %c1 = arith.constant 1 : index
    %c0_13 = arith.constant 0 : index
    %c0_14 = arith.constant 0 : index
    %17 = vector.load %arg3[%c1, %c0_13, %c0_14] : memref<2x16x16xbf16, #tpu.memory_space<vmem>>, vector<1x16x16xbf16>
    %18 = vector.shape_cast %17 : vector<1x16x16xbf16> to vector<16x16xbf16>
    %cst_15 = arith.constant dense<0.000000e+00> : vector<16x64xf32>
    %19 = tpu.matmul %18, %12, %cst_15 {dimension_numbers = #tpu.dot_dimension_numbers<[1], [0], [0], [1], [0, 0, 1, 1], [], []>} : vector<16x16xbf16>, vector<16x64xbf16>, vector<16x64xf32> -> vector<16x64xf32>
    %20 = arith.truncf %19 : vector<16x64xf32> to vector<16x64xbf16>
    %c0_16 = arith.constant 0 : index
    %c0_17 = arith.constant 0 : index
    %c0_18 = arith.constant 0 : index
    %21 = vector.load %arg4[%c0_16, %c0_17, %c0_18] : memref<3x64x64xbf16, #tpu.memory_space<vmem>>, vector<1x64x64xbf16>
    %22 = vector.shape_cast %21 : vector<1x64x64xbf16> to vector<64x64xbf16>
    %cst_19 = arith.constant dense<0.000000e+00> : vector<16x64xf32>
    %23 = tpu.matmul %16, %22, %cst_19 {dimension_numbers = #tpu.dot_dimension_numbers<[1], [0], [0], [1], [0, 0, 1, 1], [], []>} : vector<16x64xbf16>, vector<64x64xbf16>, vector<16x64xf32> -> vector<16x64xf32>
    %c1_20 = arith.constant 1 : index
    %c0_21 = arith.constant 0 : index
    %c0_22 = arith.constant 0 : index
    %24 = vector.load %arg4[%c1_20, %c0_21, %c0_22] : memref<3x64x64xbf16, #tpu.memory_space<vmem>>, vector<1x64x64xbf16>
    %25 = vector.shape_cast %24 : vector<1x64x64xbf16> to vector<64x64xbf16>
    %cst_23 = arith.constant dense<0.000000e+00> : vector<16x64xf32>
    %26 = tpu.matmul %12, %25, %cst_23 {dimension_numbers = #tpu.dot_dimension_numbers<[1], [0], [0], [1], [0, 0, 1, 1], [], []>} : vector<16x64xbf16>, vector<64x64xbf16>, vector<16x64xf32> -> vector<16x64xf32>
    %27 = arith.addf %23, %26 : vector<16x64xf32>
    %c2 = arith.constant 2 : index
    %c0_24 = arith.constant 0 : index
    %c0_25 = arith.constant 0 : index
    %28 = vector.load %arg4[%c2, %c0_24, %c0_25] : memref<3x64x64xbf16, #tpu.memory_space<vmem>>, vector<1x64x64xbf16>
    %29 = vector.shape_cast %28 : vector<1x64x64xbf16> to vector<64x64xbf16>
    %cst_26 = arith.constant dense<0.000000e+00> : vector<16x64xf32>
    %30 = tpu.matmul %20, %29, %cst_26 {dimension_numbers = #tpu.dot_dimension_numbers<[1], [0], [0], [1], [0, 0, 1, 1], [], []>} : vector<16x64xbf16>, vector<64x64xbf16>, vector<16x64xf32> -> vector<16x64xf32>
    %31 = arith.addf %27, %30 : vector<16x64xf32>
    %c0_27 = arith.constant 0 : index
    %c0_28 = arith.constant 0 : index
    %32 = vector.load %arg8[%c0_27, %c0_28] : memref<1x64xf32, #tpu.memory_space<vmem>>, vector<1x64xf32>
    %33 = vector.broadcast %32 : vector<1x64xf32> to vector<16x64xf32>
    %34 = arith.mulf %31, %33 : vector<16x64xf32>
    %c0_29 = arith.constant 0 : index
    %c0_30 = arith.constant 0 : index
    %35 = vector.load %arg9[%c0_29, %c0_30] : memref<1x64xf32, #tpu.memory_space<vmem>>, vector<1x64xf32>
    %36 = vector.broadcast %35 : vector<1x64xf32> to vector<16x64xf32>
    %37 = arith.addf %34, %36 : vector<16x64xf32>
    %cst_31 = arith.constant 0.000000e+00 : f32
    %38 = vector.broadcast %cst_31 : f32 to vector<16x64xf32>
    %39 = arith.maximumf %37, %38 : vector<16x64xf32>
    %40 = arith.truncf %39 : vector<16x64xf32> to vector<16x64xbf16>
    %c0_32 = arith.constant 0 : index
    %c0_33 = arith.constant 0 : index
    %41 = vector.load %arg5[%c0_32, %c0_33] : memref<64x256xbf16, #tpu.memory_space<vmem>>, vector<64x256xbf16>
    %cst_34 = arith.constant dense<0.000000e+00> : vector<16x256xf32>
    %42 = tpu.matmul %40, %41, %cst_34 {dimension_numbers = #tpu.dot_dimension_numbers<[1], [0], [0], [1], [0, 0, 1, 1], [], []>} : vector<16x64xbf16>, vector<64x256xbf16>, vector<16x256xf32> -> vector<16x256xf32>
    %c0_35 = arith.constant 0 : index
    %c0_36 = arith.constant 0 : index
    %43 = vector.load %arg10[%c0_35, %c0_36] : memref<1x256xf32, #tpu.memory_space<vmem>>, vector<1x256xf32>
    %44 = vector.broadcast %43 : vector<1x256xf32> to vector<16x256xf32>
    %45 = arith.mulf %42, %44 : vector<16x256xf32>
    %c0_37 = arith.constant 0 : index
    %c0_38 = arith.constant 0 : index
    %46 = vector.load %arg11[%c0_37, %c0_38] : memref<1x256xf32, #tpu.memory_space<vmem>>, vector<1x256xf32>
    %47 = vector.broadcast %46 : vector<1x256xf32> to vector<16x256xf32>
    %48 = arith.addf %45, %47 : vector<16x256xf32>
    %49 = arith.extf %1 : vector<16x256xbf16> to vector<16x256xf32>
    %50 = arith.addf %48, %49 : vector<16x256xf32>
    %cst_39 = arith.constant 0.000000e+00 : f32
    %51 = vector.broadcast %cst_39 : f32 to vector<16x256xf32>
    %52 = arith.maximumf %50, %51 : vector<16x256xf32>
    %53 = arith.truncf %52 : vector<16x256xf32> to vector<16x256xbf16>
    %c0_40 = arith.constant 0 : index
    %c0_41 = arith.constant 0 : index
    %c0_42 = arith.constant 0 : index
    %54 = vector.load %arg12[%c0_40, %c0_41, %c0_42] : memref<1x16x256xbf16, #tpu.memory_space<vmem>>, vector<1x16x256xbf16>
    %55 = vector.shape_cast %54 : vector<1x16x256xbf16> to vector<16x256xbf16>
    %56 = vector.shape_cast %53 : vector<16x256xbf16> to vector<1x16x256xbf16>
    tpu.vector_store %arg12[%c0_40, %c0_41, %c0_42], %56 {strides = array<i32>} : memref<1x16x256xbf16, #tpu.memory_space<vmem>>, vector<1x16x256xbf16>,
    return
  }
  func.func @transform_0(%arg0: i32) -> (i32, i32, i32) {
    %c0_i32 = arith.constant 0 : i32
    %c0_i32_0 = arith.constant 0 : i32
    %c0_i32_1 = arith.constant 0 : i32
    return %arg0, %c0_i32, %c0_i32_0 : i32, i32, i32
  }
  func.func @transform_1(%arg0: i32) -> (i32, i32) {
    %c0_i32 = arith.constant 0 : i32
    %c0_i32_0 = arith.constant 0 : i32
    %c0_i32_1 = arith.constant 0 : i32
    return %c0_i32, %c0_i32_0 : i32, i32
  }
  func.func @transform_2(%arg0: i32) -> (i32, i32, i32) {
    %c0_i32 = arith.constant 0 : i32
    %c0_i32_0 = arith.constant 0 : i32
    %c0_i32_1 = arith.constant 0 : i32
    %c0_i32_2 = arith.constant 0 : i32
    return %c0_i32, %c0_i32_0, %c0_i32_1 : i32, i32, i32
  }
  func.func @transform_3(%arg0: i32) -> (i32, i32, i32) {
    %c0_i32 = arith.constant 0 : i32
    %c0_i32_0 = arith.constant 0 : i32
    %c0_i32_1 = arith.constant 0 : i32
    %c0_i32_2 = arith.constant 0 : i32
    return %c0_i32, %c0_i32_0, %c0_i32_1 : i32, i32, i32
  }
  func.func @transform_4(%arg0: i32) -> (i32, i32) {
    %c0_i32 = arith.constant 0 : i32
    %c0_i32_0 = arith.constant 0 : i32
    %c0_i32_1 = arith.constant 0 : i32
    return %c0_i32, %c0_i32_0 : i32, i32
  }
  func.func @transform_5(%arg0: i32) -> (i32, i32) {
    %c0_i32 = arith.constant 0 : i32
    %c0_i32_0 = arith.constant 0 : i32
    %c0_i32_1 = arith.constant 0 : i32
    return %c0_i32, %c0_i32_0 : i32, i32
  }
  func.func @transform_6(%arg0: i32) -> (i32, i32) {
    %c0_i32 = arith.constant 0 : i32
    %c0_i32_0 = arith.constant 0 : i32
    %c0_i32_1 = arith.constant 0 : i32
    return %c0_i32, %c0_i32_0 : i32, i32
  }
  func.func @transform_7(%arg0: i32) -> (i32, i32) {
    %c0_i32 = arith.constant 0 : i32
    %c0_i32_0 = arith.constant 0 : i32
    %c0_i32_1 = arith.constant 0 : i32
    return %c0_i32, %c0_i32_0 : i32, i32
  }
  func.func @transform_8(%arg0: i32) -> (i32, i32) {
    %c0_i32 = arith.constant 0 : i32
    %c0_i32_0 = arith.constant 0 : i32
    %c0_i32_1 = arith.constant 0 : i32
    return %c0_i32, %c0_i32_0 : i32, i32
  }
  func.func @transform_9(%arg0: i32) -> (i32, i32) {
    %c0_i32 = arith.constant 0 : i32
    %c0_i32_0 = arith.constant 0 : i32
    %c0_i32_1 = arith.constant 0 : i32
    return %c0_i32, %c0_i32_0 : i32, i32
  }
  func.func @transform_10(%arg0: i32) -> (i32, i32) {
    %c0_i32 = arith.constant 0 : i32
    %c0_i32_0 = arith.constant 0 : i32
    %c0_i32_1 = arith.constant 0 : i32
    return %c0_i32, %c0_i32_0 : i32, i32
  }
  func.func @transform_11(%arg0: i32) -> (i32, i32, i32) {
    %c0_i32 = arith.constant 0 : i32
    %c0_i32_0 = arith.constant 0 : i32
    %c0_i32_1 = arith.constant 0 : i32
    return %arg0, %c0_i32, %c0_i32_0 : i32, i32, i32
  }
}

</mosaic_0001>

<llo_original>
// kernel: tpu_custom_call.1
$region0: #{tpu_custom_call.1}
  #allocation0 [shape = 'u32[]', space=smem, size = 0x4, offset = 0x4, fixed_abs, tag = 'smem constant byte address 0x4 - core index']
  #allocation1 [shape = 'u32[144,128]{1,0:T(1,128)}', space=vmem, size = 0x12000, scoped, tag = 'internal scratch']
  %s0 = inlined_call_operand.vmem [shape: bf16[2,16,256], index: 0, kind: input, shape index: {}]
  %s1 = inlined_call_operand.vmem [shape: bf16[256,64], index: 1, kind: input, shape index: {}]
  %s2 = inlined_call_operand.hbm [shape: bf16[2,16,16], index: 2, kind: input, shape index: {}]
  %s3 = inlined_call_operand.vmem [shape: bf16[3,64,64], index: 3, kind: input, shape index: {}]
  %s4 = inlined_call_operand.vmem [shape: bf16[64,256], index: 4, kind: input, shape index: {}]
  %s5 = inlined_call_operand.vmem [shape: f32[1,64], index: 5, kind: input, shape index: {}]
  %s6 = inlined_call_operand.vmem [shape: f32[1,64], index: 6, kind: input, shape index: {}]
  %s7 = inlined_call_operand.vmem [shape: f32[1,64], index: 7, kind: input, shape index: {}]
  %s8 = inlined_call_operand.vmem [shape: f32[1,64], index: 8, kind: input, shape index: {}]
  %s9 = inlined_call_operand.vmem [shape: f32[1,256], index: 9, kind: input, shape index: {}]
  %s10 = inlined_call_operand.vmem [shape: f32[1,256], index: 10, kind: input, shape index: {}]
  %s11 = inlined_call_operand.hbm [shape: bf16[2,16,256], index: 11, kind: output, shape index: {}]
  %s12 = sld [smem:[#allocation0]]
  $region81: #{tpu_custom_call.1} parent=0
    _
  %s14 = ssub.s32 1, %s12
  %s15 = scalar_select 0, %s14, %s12
  $region1: #{tpu_custom_call.1} parent=0
    #allocation2 [shape = 'u8[8192]{0}', space=vmem, size = 0x2000, scoped, tag = 'input window, operand 2, single buffered']
    #allocation3 [shape = 's32[2]{0}', space=sflag, size = 0x8, scoped, tag = 'scoped memory for tpu_custom_call.1']
    #allocation4 [shape = 's32[2]{0}', space=sflag, size = 0x8, scoped, tag = 'scoped memory for tpu_custom_call.1']
    #allocation5 [shape = 'u8[16384]{0}', space=vmem, size = 0x4000, scoped, tag = 'output window, operand 0']
    %16 = vsyncpa [#allocation3], 0
    %17 = vsyncpa [#allocation4], 0
    %s18 = scalar_lea.sflag [#allocation4], 1
    %19 = vsyncpa %s18, 0
    loop: start=0, step=1, limit=4
    $region2: #{tpu_custom_call.1} parent=1 // loop_pre_header
      _
    $region3: #{tpu_custom_call.1} parent=1 // loop_header
      %s21 = sphi 0, %s25
      %p22 = scmp.ge.s32.totalorder %s21, 4
      %s31 = sphi 0, %s33
      %s34 = sphi 0, %s31
      %s35 = sphi 0, %s34
      %s51 = sphi 0, %s35
      %s55 = sphi 0, %s55
      %s57 = sphi 0, %s55
      %s58 = sphi 0, %s57
      %s72 = sphi 0, %s58
      %s76 = sphi 0, %s76
      %s78 = sphi 0, %s76
      %s79 = sphi 0, %s78
      %s93 = sphi 0, %s79
      %s97 = sphi 0, %s97
      %s99 = sphi 0, %s97
      %s100 = sphi 0, %s99
      %s114 = sphi 0, %s100
      %s118 = sphi 0, %s118
      %s120 = sphi 0, %s118
      %s121 = sphi 0, %s120
      %s135 = sphi 0, %s121
      %s139 = sphi 0, %s139
      %s141 = sphi 0, %s139
      %s142 = sphi 0, %s141
      %s156 = sphi 0, %s142
      %s160 = sphi 0, %s160
      %s162 = sphi 0, %s160
      %s163 = sphi 0, %s162
      %s177 = sphi 0, %s163
      %s181 = sphi 0, %s181
      %s183 = sphi 0, %s181
      %s184 = sphi 0, %s183
      %s198 = sphi 0, %s184
      %s202 = sphi 0, %s202
      %s204 = sphi 0, %s202
      %s205 = sphi 0, %s204
      %s219 = sphi 0, %s205
      %s223 = sphi 0, %s223
      %s225 = sphi 0, %s223
      %s226 = sphi 0, %s225
      %s240 = sphi 0, %s226
      %s244 = sphi 0, %s244
      %s246 = sphi 0, %s244
      %s247 = sphi 0, %s246
      %s261 = sphi 0, %s247
      %s267 = sphi 0, %s269
      %s270 = sphi 0, %s267
      %s271 = sphi 0, %s270
      %s287 = sphi 0, %s271
    $region4: #{tpu_custom_call.1} parent=1 // loop_header_branch
      %24 = sbr.rel (%p22) target = $region8
    $region5: #{tpu_custom_call.1} parent=1 // loop_body
      %s26 = ssub.s32 %s21, 1
      %s27 = ssub.s32 %s21, 2
      %s28 = sadd.s32 %s21, 1
      %s29 = ssub.s32 %s21, %s28
      %p30 = scmp.eq.s32.totalorder %s29, 0
      %s32 = sadd.s32 %s31, 1
      %s33 = scalar_select %p30, %s31, %s32
      %p36 = pneg %p30
      %p37 = scmp.eq.s32.totalorder %s21, 1
      %p38 = por %p36, %p37
      %p39 = scmp.ne.s32.totalorder %s31, %s34
      %p40 = scmp.eq.s32.totalorder %s21, 0
      %p41 = por %p39, %p40
      %p42 = scmp.ne.s32.totalorder %s31, %s34
      %p43 = scmp.eq.s32.totalorder %s26, 1
      %p44 = por %p42, %p43
      %p45 = scmp.ne.s32.totalorder %s34, %s35
      %p46 = scmp.eq.s32.totalorder %s26, 0
      %p47 = por %p45, %p46
      %p48 = scmp.ne.s32.totalorder %s34, %s35
      %p49 = scmp.eq.s32.totalorder %s27, 1
      %p50 = por %p48, %p49
      %p52 = scmp.ne.s32.totalorder %s35, %s51
      %p53 = scmp.eq.s32.totalorder %s27, 0
      %p54 = por %p52, %p53
      %s56 = sadd.s32 %s55, 1
      %p59 = scmp.eq.s32.totalorder %s21, 1
      %p60 = scmp.ne.s32.totalorder %s55, %s57
      %p61 = scmp.eq.s32.totalorder %s21, 0
      %p62 = por %p60, %p61
      %p63 = scmp.ne.s32.totalorder %s55, %s57
      %p64 = scmp.eq.s32.totalorder %s26, 1
      %p65 = por %p63, %p64
      %p66 = scmp.ne.s32.totalorder %s57, %s58
      %p67 = scmp.eq.s32.totalorder %s26, 0
      %p68 = por %p66, %p67
      %p69 = scmp.ne.s32.totalorder %s57, %s58
      %p70 = scmp.eq.s32.totalorder %s27, 1
      %p71 = por %p69, %p70
      %p73 = scmp.ne.s32.totalorder %s58, %s72
      %p74 = scmp.eq.s32.totalorder %s27, 0
      %p75 = por %p73, %p74
      %s77 = sadd.s32 %s76, 1
      %p80 = scmp.eq.s32.totalorder %s21, 1
      %p81 = scmp.ne.s32.totalorder %s76, %s78
      %p82 = scmp.eq.s32.totalorder %s21, 0
      %p83 = por %p81, %p82
      %p84 = scmp.ne.s32.totalorder %s76, %s78
      %p85 = scmp.eq.s32.totalorder %s26, 1
      %p86 = por %p84, %p85
      %p87 = scmp.ne.s32.totalorder %s78, %s79
      %p88 = scmp.eq.s32.totalorder %s26, 0
      %p89 = por %p87, %p88
      %p90 = scmp.ne.s32.totalorder %s78, %s79
      %p91 = scmp.eq.s32.totalorder %s27, 1
      %p92 = por %p90, %p91
      %p94 = scmp.ne.s32.totalorder %s79, %s93
      %p95 = scmp.eq.s32.totalorder %s27, 0
      %p96 = por %p94, %p95
      %s98 = sadd.s32 %s97, 1
      %p101 = scmp.eq.s32.totalorder %s21, 1
      %p102 = scmp.ne.s32.totalorder %s97, %s99
      %p103 = scmp.eq.s32.totalorder %s21, 0
      %p104 = por %p102, %p103
      %p105 = scmp.ne.s32.totalorder %s97, %s99
      %p106 = scmp.eq.s32.totalorder %s26, 1
      %p107 = por %p105, %p106
      %p108 = scmp.ne.s32.totalorder %s99, %s100
      %p109 = scmp.eq.s32.totalorder %s26, 0
      %p110 = por %p108, %p109
      %p111 = scmp.ne.s32.totalorder %s99, %s100
      %p112 = scmp.eq.s32.totalorder %s27, 1
      %p113 = por %p111, %p112
      %p115 = scmp.ne.s32.totalorder %s100, %s114
      %p116 = scmp.eq.s32.totalorder %s27, 0
      %p117 = por %p115, %p116
      %s119 = sadd.s32 %s118, 1
      %p122 = scmp.eq.s32.totalorder %s21, 1
      %p123 = scmp.ne.s32.totalorder %s118, %s120
      %p124 = scmp.eq.s32.totalorder %s21, 0
      %p125 = por %p123, %p124
      %p126 = scmp.ne.s32.totalorder %s118, %s120
      %p127 = scmp.eq.s32.totalorder %s26, 1
      %p128 = por %p126, %p127
      %p129 = scmp.ne.s32.totalorder %s120, %s121
      %p130 = scmp.eq.s32.totalorder %s26, 0
      %p131 = por %p129, %p130
      %p132 = scmp.ne.s32.totalorder %s120, %s121
      %p133 = scmp.eq.s32.totalorder %s27, 1
      %p134 = por %p132, %p133
      %p136 = scmp.ne.s32.totalorder %s121, %s135
      %p137 = scmp.eq.s32.totalorder %s27, 0
      %p138 = por %p136, %p137
      %s140 = sadd.s32 %s139, 1
      %p143 = scmp.eq.s32.totalorder %s21, 1
      %p144 = scmp.ne.s32.totalorder %s139, %s141
      %p145 = scmp.eq.s32.totalorder %s21, 0
      %p146 = por %p144, %p145
      %p147 = scmp.ne.s32.totalorder %s139, %s141
      %p148 = scmp.eq.s32.totalorder %s26, 1
      %p149 = por %p147, %p148
      %p150 = scmp.ne.s32.totalorder %s141, %s142
      %p151 = scmp.eq.s32.totalorder %s26, 0
      %p152 = por %p150, %p151
      %p153 = scmp.ne.s32.totalorder %s141, %s142
      %p154 = scmp.eq.s32.totalorder %s27, 1
      %p155 = por %p153, %p154
      %p157 = scmp.ne.s32.totalorder %s142, %s156
      %p158 = scmp.eq.s32.totalorder %s27, 0
      %p159 = por %p157, %p158
      %s161 = sadd.s32 %s160, 1
      %p164 = scmp.eq.s32.totalorder %s21, 1
      %p165 = scmp.ne.s32.totalorder %s160, %s162
      %p166 = scmp.eq.s32.totalorder %s21, 0
      %p167 = por %p165, %p166
      %p168 = scmp.ne.s32.totalorder %s160, %s162
      %p169 = scmp.eq.s32.totalorder %s26, 1
      %p170 = por %p168, %p169
      %p171 = scmp.ne.s32.totalorder %s162, %s163
      %p172 = scmp.eq.s32.totalorder %s26, 0
      %p173 = por %p171, %p172
      %p174 = scmp.ne.s32.totalorder %s162, %s163
      %p175 = scmp.eq.s32.totalorder %s27, 1
      %p176 = por %p174, %p175
      %p178 = scmp.ne.s32.totalorder %s163, %s177
      %p179 = scmp.eq.s32.totalorder %s27, 0
      %p180 = por %p178, %p179
      %s182 = sadd.s32 %s181, 1
      %p185 = scmp.eq.s32.totalorder %s21, 1
      %p186 = scmp.ne.s32.totalorder %s181, %s183
      %p187 = scmp.eq.s32.totalorder %s21, 0
      %p188 = por %p186, %p187
      %p189 = scmp.ne.s32.totalorder %s181, %s183
      %p190 = scmp.eq.s32.totalorder %s26, 1
      %p191 = por %p189, %p190
      %p192 = scmp.ne.s32.totalorder %s183, %s184
      %p193 = scmp.eq.s32.totalorder %s26, 0
      %p194 = por %p192, %p193
      %p195 = scmp.ne.s32.totalorder %s183, %s184
      %p196 = scmp.eq.s32.totalorder %s27, 1
      %p197 = por %p195, %p196
      %p199 = scmp.ne.s32.totalorder %s184, %s198
      %p200 = scmp.eq.s32.totalorder %s27, 0
      %p201 = por %p199, %p200
      %s203 = sadd.s32 %s202, 1
      %p206 = scmp.eq.s32.totalorder %s21, 1
      %p207 = scmp.ne.s32.totalorder %s202, %s204
      %p208 = scmp.eq.s32.totalorder %s21, 0
      %p209 = por %p207, %p208
      %p210 = scmp.ne.s32.totalorder %s202, %s204
      %p211 = scmp.eq.s32.totalorder %s26, 1
      %p212 = por %p210, %p211
      %p213 = scmp.ne.s32.totalorder %s204, %s205
      %p214 = scmp.eq.s32.totalorder %s26, 0
      %p215 = por %p213, %p214
      %p216 = scmp.ne.s32.totalorder %s204, %s205
      %p217 = scmp.eq.s32.totalorder %s27, 1
      %p218 = por %p216, %p217
      %p220 = scmp.ne.s32.totalorder %s205, %s219
      %p221 = scmp.eq.s32.totalorder %s27, 0
      %p222 = por %p220, %p221
      %s224 = sadd.s32 %s223, 1
      %p227 = scmp.eq.s32.totalorder %s21, 1
      %p228 = scmp.ne.s32.totalorder %s223, %s225
      %p229 = scmp.eq.s32.totalorder %s21, 0
      %p230 = por %p228, %p229
      %p231 = scmp.ne.s32.totalorder %s223, %s225
      %p232 = scmp.eq.s32.totalorder %s26, 1
      %p233 = por %p231, %p232
      %p234 = scmp.ne.s32.totalorder %s225, %s226
      %p235 = scmp.eq.s32.totalorder %s26, 0
      %p236 = por %p234, %p235
      %p237 = scmp.ne.s32.totalorder %s225, %s226
      %p238 = scmp.eq.s32.totalorder %s27, 1
      %p239 = por %p237, %p238
      %p241 = scmp.ne.s32.totalorder %s226, %s240
      %p242 = scmp.eq.s32.totalorder %s27, 0
      %p243 = por %p241, %p242
      %s245 = sadd.s32 %s244, 1
      %p248 = scmp.eq.s32.totalorder %s21, 1
      %p249 = scmp.ne.s32.totalorder %s244, %s246
      %p250 = scmp.eq.s32.totalorder %s21, 0
      %p251 = por %p249, %p250
      %p252 = scmp.ne.s32.totalorder %s244, %s246
      %p253 = scmp.eq.s32.totalorder %s26, 1
      %p254 = por %p252, %p253
      %p255 = scmp.ne.s32.totalorder %s246, %s247
      %p256 = scmp.eq.s32.totalorder %s26, 0
      %p257 = por %p255, %p256
      %p258 = scmp.ne.s32.totalorder %s246, %s247
      %p259 = scmp.eq.s32.totalorder %s27, 1
      %p260 = por %p258, %p259
      %p262 = scmp.ne.s32.totalorder %s247, %s261
      %p263 = scmp.eq.s32.totalorder %s27, 0
      %p264 = por %p262, %p263
      %s265 = ssub.s32 %s21, %s28
      %p266 = scmp.eq.s32.totalorder %s265, 0
      %s268 = sadd.s32 %s267, 1
      %s269 = scalar_select %p266, %s267, %s268
      %p272 = pneg %p266
      %p273 = scmp.eq.s32.totalorder %s21, 1
      %p274 = por %p272, %p273
      %p275 = scmp.ne.s32.totalorder %s267, %s270
      %p276 = scmp.eq.s32.totalorder %s21, 0
      %p277 = por %p275, %p276
      %p278 = scmp.ne.s32.totalorder %s267, %s270
      %p279 = scmp.eq.s32.totalorder %s26, 1
      %p280 = por %p278, %p279
      %p281 = scmp.ne.s32.totalorder %s270, %s271
      %p282 = scmp.eq.s32.totalorder %s26, 0
      %p283 = por %p281, %p282
      %p284 = scmp.ne.s32.totalorder %s270, %s271
      %p285 = scmp.eq.s32.totalorder %s27, 1
      %p286 = por %p284, %p285
      %p288 = scmp.ne.s32.totalorder %s271, %s287
      %p289 = scmp.eq.s32.totalorder %s27, 0
      %p290 = por %p288, %p289
      %p291 = scmp.le.s32.totalorder 1, %s21
      %p292 = scmp.lt.s32.totalorder %s21, 3
      %p293 = pnand %p291, %p292
      %p294 = pneg %p293
      // Predicated region
      $region9: #{tpu_custom_call.1} parent=5 // pred_check
        _
      $region10: #{tpu_custom_call.1} parent=5 // pred_check_branch
        %296 = sbr.rel (%p293) target = $region12
      $region11: #{tpu_custom_call.1} parent=5 // pred_region
        %s297 = ssub.s32 %s21, 1
        // Predicated region
        $region13: #{tpu_custom_call.1} parent=11 // pred_check
          %p298 = pneg %p68
        $region14: #{tpu_custom_call.1} parent=11 // pred_check_branch
          %300 = sbr.rel (%p298) target = $region16
        $region15: #{tpu_custom_call.1} parent=11 // pred_region
          _
        $region16: #{tpu_custom_call.1} parent=11 // pred_fallthru
          _
        // Predicated region
        $region17: #{tpu_custom_call.1} parent=11 // pred_check
          %p301 = pneg %p89
        $region18: #{tpu_custom_call.1} parent=11 // pred_check_branch
          %303 = sbr.rel (%p301) target = $region20
        $region19: #{tpu_custom_call.1} parent=11 // pred_region
          %s305 = ssub.s32 256, 256
          %306 = vsyncadd [#allocation3], %s305
          %s307 = sshll.u32 [#allocation2], 4
          %s308 = int_to_ptr.vmem [resolvable:$true] %s307
          %313 = dma.hbm_to_vmem [thread:$0]  %s2, 256, %s308, [#allocation3], 64, 64, 4
        $region20: #{tpu_custom_call.1} parent=11 // pred_fallthru
          _
        // Predicated region
        $region21: #{tpu_custom_call.1} parent=11 // pred_check
          %p314 = pneg %p110
        $region22: #{tpu_custom_call.1} parent=11 // pred_check_branch
          %316 = sbr.rel (%p314) target = $region24
        $region23: #{tpu_custom_call.1} parent=11 // pred_region
          _
        $region24: #{tpu_custom_call.1} parent=11 // pred_fallthru
          _
        // Predicated region
        $region25: #{tpu_custom_call.1} parent=11 // pred_check
          %p317 = pneg %p131
        $region26: #{tpu_custom_call.1} parent=11 // pred_check_branch
          %319 = sbr.rel (%p317) target = $region28
        $region27: #{tpu_custom_call.1} parent=11 // pred_region
          _
        $region28: #{tpu_custom_call.1} parent=11 // pred_fallthru
          _
        // Predicated region
        $region29: #{tpu_custom_call.1} parent=11 // pred_check
          %p320 = pneg %p152
        $region30: #{tpu_custom_call.1} parent=11 // pred_check_branch
          %322 = sbr.rel (%p320) target = $region32
        $region31: #{tpu_custom_call.1} parent=11 // pred_region
          _
        $region32: #{tpu_custom_call.1} parent=11 // pred_fallthru
          _
        // Predicated region
        $region33: #{tpu_custom_call.1} parent=11 // pred_check
          %p323 = pneg %p173
        $region34: #{tpu_custom_call.1} parent=11 // pred_check_branch
          %325 = sbr.rel (%p323) target = $region36
        $region35: #{tpu_custom_call.1} parent=11 // pred_region
          _
        $region36: #{tpu_custom_call.1} parent=11 // pred_fallthru
          _
        // Predicated region
        $region37: #{tpu_custom_call.1} parent=11 // pred_check
          %p326 = pneg %p194
        $region38: #{tpu_custom_call.1} parent=11 // pred_check_branch
          %328 = sbr.rel (%p326) target = $region40
        $region39: #{tpu_custom_call.1} parent=11 // pred_region
          _
        $region40: #{tpu_custom_call.1} parent=11 // pred_fallthru
          _
        // Predicated region
        $region41: #{tpu_custom_call.1} parent=11 // pred_check
          %p329 = pneg %p215
        $region42: #{tpu_custom_call.1} parent=11 // pred_check_branch
          %331 = sbr.rel (%p329) target = $region44
        $region43: #{tpu_custom_call.1} parent=11 // pred_region
          _
        $region44: #{tpu_custom_call.1} parent=11 // pred_fallthru
          _
        // Predicated region
        $region45: #{tpu_custom_call.1} parent=11 // pred_check
          %p332 = pneg %p236
        $region46: #{tpu_custom_call.1} parent=11 // pred_check_branch
          %334 = sbr.rel (%p332) target = $region48
        $region47: #{tpu_custom_call.1} parent=11 // pred_region
          _
        $region48: #{tpu_custom_call.1} parent=11 // pred_fallthru
          _
        // Predicated region
        $region49: #{tpu_custom_call.1} parent=11 // pred_check
          %p335 = pneg %p257
        $region50: #{tpu_custom_call.1} parent=11 // pred_check_branch
          %337 = sbr.rel (%p335) target = $region52
        $region51: #{tpu_custom_call.1} parent=11 // pred_region
          _
        $region52: #{tpu_custom_call.1} parent=11 // pred_fallthru
          _
      $region12: #{tpu_custom_call.1} parent=5 // pred_fallthru
        _
      %p338 = scmp.lt.s32.totalorder %s21, 2
      // Predicated region
      $region53: #{tpu_custom_call.1} parent=5 // pred_check
        %p339 = pneg %p338
      $region54: #{tpu_custom_call.1} parent=5 // pred_check_branch
        %341 = sbr.rel (%p339) target = $region56
      $region55: #{tpu_custom_call.1} parent=5 // pred_region
        // Predicated region
        $region57: #{tpu_custom_call.1} parent=55 // pred_check
          %p342 = pneg %p41
        $region58: #{tpu_custom_call.1} parent=55 // pred_check_branch
          %344 = sbr.rel (%p342) target = $region60
        $region59: #{tpu_custom_call.1} parent=55 // pred_region
          %p345 = scmp.lt.s32.totalorder %s21, 1
          %s346 = scalar_select %p345, %s21, 1
          %s347 = smul.addr %s346, 4
          %s348 = smul.addr %s347, 4
          %s349 = scalar_lea.vmem %s0, %s348
        $region60: #{tpu_custom_call.1} parent=55 // pred_fallthru
          _
      $region56: #{tpu_custom_call.1} parent=5 // pred_fallthru
        _
      %p350 = scmp.le.s32.totalorder 1, %s21
      %p351 = scmp.lt.s32.totalorder %s21, 3
      %p352 = pnand %p350, %p351
      %p353 = pneg %p352
      // Predicated region
      $region61: #{tpu_custom_call.1} parent=5 // pred_check
        _
      $region62: #{tpu_custom_call.1} parent=5 // pred_check_branch
        %355 = sbr.rel (%p352) target = $region64
      $region63: #{tpu_custom_call.1} parent=5 // pred_region
        %s356 = ssub.s32 %s21, 1
        // Predicated region
        $region65: #{tpu_custom_call.1} parent=63 // pred_check
          %p357 = pneg %p89
        $region66: #{tpu_custom_call.1} parent=63 // pred_check_branch
          %359 = sbr.rel (%p357) target = $region68
        $region67: #{tpu_custom_call.1} parent=63 // pred_region
          %360 = dma.done [#allocation3], 256
        $region68: #{tpu_custom_call.1} parent=63 // pred_fallthru
          _
        %p361 = scmp.lt.s32.totalorder %s26, 1
        %s362 = scalar_select %p361, %s26, 1
        %s363 = smul.addr %s362, 4
        %s364 = smul.addr %s363, 4
        %s365 = scalar_lea.vmem %s0, %s364
        %p366 = pneg %p47
        %p367 = pneg %p44
        %p368 = pneg %p68
        %p369 = pneg %p65
        %p370 = pneg %p89
        %p371 = pneg %p86
        %p372 = pneg %p110
        %p373 = pneg %p107
        %p374 = pneg %p131
        %p375 = pneg %p128
        %p376 = pneg %p152
        %p377 = pneg %p149
        %p378 = pneg %p173
        %p379 = pneg %p170
        %p380 = pneg %p194
        %p381 = pneg %p191
        %p382 = pneg %p215
        %p383 = pneg %p212
        %p384 = pneg %p236
        %p385 = pneg %p233
        %p386 = pneg %p257
        %p387 = pneg %p254
        %p388 = pneg %p283
        %p389 = pneg %p280
        %s390 = sand.u32 %s270, 1
        %s391 = scalar_lea.sflag [#allocation4], %s390
        %s392 = sand.u32 %s270, 1
        %s393 = smul.addr %s392, 16
        %s394 = scalar_lea.vmem [#allocation5], %s393
        %p395 = scmp.lt.s32.totalorder %s26, 1
        %s396 = scalar_select %p395, %s26, 1
        %s397 = smul.addr %s396, 4
        %s398 = smul.addr %s397, 4
        %s399 = scalar_lea.vmem %s0, %s398
        %v401 = vld [vmem:[%s399] sm:$0xff]
        %v402 = vld [vmem:[%s399 + $0x8] sm:$0xff]
        %v403 = vld [vmem:[%s1] sm:$0xf]
        %v404 = vld [vmem:[%s1 + $0x4] sm:$0xf]
        %v405 = vld [vmem:[%s1 + $0x8] sm:$0xf]
        %v406 = vld [vmem:[%s1 + $0xc] sm:$0xf]
        %v407 = vld [vmem:[%s1 + $0x10] sm:$0xf]
        %v408 = vld [vmem:[%s1 + $0x14] sm:$0xf]
        %v409 = vld [vmem:[%s1 + $0x18] sm:$0xf]
        %v410 = vld [vmem:[%s1 + $0x1c] sm:$0xf]
        %v411 = vld [vmem:[%s1 + $0x20] sm:$0xf]
        %v412 = vld [vmem:[%s1 + $0x24] sm:$0xf]
        %v413 = vld [vmem:[%s1 + $0x28] sm:$0xf]
        %v414 = vld [vmem:[%s1 + $0x2c] sm:$0xf]
        %v415 = vld [vmem:[%s1 + $0x30] sm:$0xf]
        %v416 = vld [vmem:[%s1 + $0x34] sm:$0xf]
        %v417 = vld [vmem:[%s1 + $0x38] sm:$0xf]
        %v418 = vld [vmem:[%s1 + $0x3c] sm:$0xf]
        %v419 = vld [vmem:[%s1 + $0x40] sm:$0xf]
        %v420 = vld [vmem:[%s1 + $0x44] sm:$0xf]
        %v421 = vld [vmem:[%s1 + $0x48] sm:$0xf]
        %v422 = vld [vmem:[%s1 + $0x4c] sm:$0xf]
        %v423 = vld [vmem:[%s1 + $0x50] sm:$0xf]
        %v424 = vld [vmem:[%s1 + $0x54] sm:$0xf]
        %v425 = vld [vmem:[%s1 + $0x58] sm:$0xf]
        %v426 = vld [vmem:[%s1 + $0x5c] sm:$0xf]
        %v427 = vld [vmem:[%s1 + $0x60] sm:$0xf]
        %v428 = vld [vmem:[%s1 + $0x64] sm:$0xf]
        %v429 = vld [vmem:[%s1 + $0x68] sm:$0xf]
        %v430 = vld [vmem:[%s1 + $0x6c] sm:$0xf]
        %v431 = vld [vmem:[%s1 + $0x70] sm:$0xf]
        %v432 = vld [vmem:[%s1 + $0x74] sm:$0xf]
        %v433 = vld [vmem:[%s1 + $0x78] sm:$0xf]
        %v434 = vld [vmem:[%s1 + $0x7c] sm:$0xf]
        %v437 = vunpack.c.l.b16 %v401
        %v438 = vunpack.c.h.b16 %v401
        %v439 = vunpack.c.l.b16 %v402
        %v440 = vunpack.c.h.b16 %v402
        %v441 = vpack.c.b16 %v439, %v437
        %v442 = vpack.c.b16 %v440, %v438
        %v477 = vunpack.c.l.b16 %v403
        %v478 = vunpack.c.l.b16 %v404
        %v479 = vunpack.c.l.b16 %v405
        %v480 = vunpack.c.l.b16 %v406
        %v481 = vunpack.c.l.b16 %v407
        %v482 = vunpack.c.l.b16 %v408
        %v483 = vunpack.c.l.b16 %v409
        %v484 = vunpack.c.l.b16 %v410
        %v485 = vunpack.c.l.b16 %v411
        %v486 = vunpack.c.l.b16 %v412
        %v487 = vunpack.c.l.b16 %v413
        %v488 = vunpack.c.l.b16 %v414
        %v489 = vunpack.c.l.b16 %v415
        %v490 = vunpack.c.l.b16 %v416
        %v491 = vunpack.c.l.b16 %v417
        %v492 = vunpack.c.l.b16 %v418
        %v493 = vunpack.c.l.b16 %v419
        %v494 = vunpack.c.l.b16 %v420
        %v495 = vunpack.c.l.b16 %v421
        %v496 = vunpack.c.l.b16 %v422
        %v497 = vunpack.c.l.b16 %v423
        %v498 = vunpack.c.l.b16 %v424
        %v499 = vunpack.c.l.b16 %v425
        %v500 = vunpack.c.l.b16 %v426
        %v501 = vunpack.c.l.b16 %v427
        %v502 = vunpack.c.l.b16 %v428
        %v503 = vunpack.c.l.b16 %v429
        %v504 = vunpack.c.l.b16 %v430
        %v505 = vunpack.c.l.b16 %v431
        %v506 = vunpack.c.l.b16 %v432
        %v507 = vunpack.c.l.b16 %v433
        %v508 = vunpack.c.l.b16 %v434
        %v509 = vpack.c.b16 %v478, %v477
        %v510 = vpack.c.b16 %v480, %v479
        %v511 = vpack.c.b16 %v482, %v481
        %v512 = vpack.c.b16 %v484, %v483
        %v513 = vpack.c.b16 %v486, %v485
        %v514 = vpack.c.b16 %v488, %v487
        %v515 = vpack.c.b16 %v490, %v489
        %v516 = vpack.c.b16 %v492, %v491
        %v517 = vpack.c.b16 %v494, %v493
        %v518 = vpack.c.b16 %v496, %v495
        %v519 = vpack.c.b16 %v498, %v497
        %v520 = vpack.c.b16 %v500, %v499
        %v521 = vpack.c.b16 %v502, %v501
        %v522 = vpack.c.b16 %v504, %v503
        %v523 = vpack.c.b16 %v506, %v505
        %v524 = vpack.c.b16 %v508, %v507
        %541 = vmatprep.subr.bf16.mxu0 0
        %542 = vmatpush1.bf16.msra.mxu0 %v509
        %543 = vmatprep.subr.bf16.mxu0 0
        %544 = vmatpush1.bf16.msra.mxu0 %v510
        %545 = vmatprep.subr.bf16.mxu0 0
        %546 = vmatpush1.bf16.msra.mxu0 %v511
        %547 = vmatprep.subr.bf16.mxu0 0
        %548 = vmatpush1.bf16.msra.mxu0 %v512
        %549 = vmatprep.subr.bf16.mxu0 0
        %550 = vmatpush1.bf16.msra.mxu0 %v513
        %551 = vmatprep.subr.bf16.mxu0 0
        %552 = vmatpush1.bf16.msra.mxu0 %v514
        %553 = vmatprep.subr.bf16.mxu0 0
        %554 = vmatpush1.bf16.msra.mxu0 %v515
        %555 = vmatprep.subr.bf16.mxu0 0
        %556 = vmatpush1.bf16.msra.mxu0 %v516
        %557 = vmatprep.subr.bf16.mxu0 0
        %558 = vmatpush1.bf16.msra.mxu0 %v517
        %559 = vmatprep.subr.bf16.mxu0 0
        %560 = vmatpush1.bf16.msra.mxu0 %v518
        %561 = vmatprep.subr.bf16.mxu0 0
        %562 = vmatpush1.bf16.msra.mxu0 %v519
        %563 = vmatprep.subr.bf16.mxu0 0
        %564 = vmatpush1.bf16.msra.mxu0 %v520
        %565 = vmatprep.subr.bf16.mxu0 0
        %566 = vmatpush1.bf16.msra.mxu0 %v521
        %567 = vmatprep.subr.bf16.mxu0 0
        %568 = vmatpush1.bf16.msra.mxu0 %v522
        %569 = vmatprep.subr.bf16.mxu0 0
        %570 = vmatpush1.bf16.msra.mxu0 %v523
        %571 = vmatprep.subr.bf16.mxu0 0
        %572 = vmatpush1.bf16.msra.mxu0 %v524
        %573 = vmatprep.mubr.bf16.mxu0 %v442
        %574 = vmatmul.mubr.bf16.gmra.mrb[0].mxu0 %v441
        %v575 = vpop.f32.mrb[0].mxu0
        %v576 = vadd.f32 0.0, %v575
        %v577 = vpop.f32.mrb[0].mxu0
        %v578 = vpop.f32.mrb[0].mxu0
        %v579 = vadd.f32 0.0, %v578
        %v580 = vpop.f32.mrb[0].mxu0
        %581 = vdwg.mxu0
        %v582 = vld [vmem:[%s5] sm:$0x1]
        %v584 = vlaneseq
        %v585 = vshrl.u32 %v584, 7
        %v586 = vsub.s32 0, %v585
        %v587 = vrot.slane %v582, %v586
        %v589 = vmul.f32 %v576, %v587
        %v590 = vmul.f32 %v579, %v587
        %v591 = vld [vmem:[%s6] sm:$0x1]
        %v593 = vlaneseq
        %v594 = vshrl.u32 %v593, 7
        %v595 = vsub.s32 0, %v594
        %v596 = vrot.slane %v591, %v595
        %v598 = vadd.f32 %v589, %v596
        %v599 = vadd.f32 %v590, %v596
        %v600 = vmax.f32 %v598, 0.0
        %v601 = vmax.f32 %v599, 0.0
        %v602 = vpack.c.bf16 %v601, %v600
        %v603 = vld [vmem:[#allocation2] sm:$0xf]
        %v604 = vld [vmem:[#allocation2 + $0x4] sm:$0xf]
        %v607 = vunpack.c.l.b16 %v603
        %v608 = vunpack.c.l.b16 %v604
        %v609 = vpack.c.b16 %v608, %v607
        %vm610 = vcmask 130048
        %v612 = vsel %vm610, %v609, 0
        %614 = vmatprep.subr.bf16.mxu0 0
        %615 = vmatpush1.bf16.msra.mxu0 %v602
        %616 = vmatprep.subr.bf16.mxu0 0
        %617 = vmatpush1.bf16.msra.mxu0 0
        %618 = vmatprep.subr.bf16.mxu0 0
        %619 = vmatpush1.bf16.msra.mxu0 0
        %620 = vmatprep.subr.bf16.mxu0 0
        %621 = vmatpush1.bf16.msra.mxu0 0
        %622 = vmatprep.subr.bf16.mxu0 0
        %623 = vmatpush1.bf16.msra.mxu0 0
        %624 = vmatprep.subr.bf16.mxu0 0
        %625 = vmatpush1.bf16.msra.mxu0 0
        %626 = vmatprep.subr.bf16.mxu0 0
        %627 = vmatpush1.bf16.msra.mxu0 0
        %628 = vmatprep.subr.bf16.mxu0 0
        %629 = vmatpush1.bf16.msra.mxu0 0
        %630 = vmatprep.subr.bf16.mxu0 0
        %631 = vmatpush1.bf16.msra.mxu0 0
        %632 = vmatprep.subr.bf16.mxu0 0
        %633 = vmatpush1.bf16.msra.mxu0 0
        %634 = vmatprep.subr.bf16.mxu0 0
        %635 = vmatpush1.bf16.msra.mxu0 0
        %636 = vmatprep.subr.bf16.mxu0 0
        %637 = vmatpush1.bf16.msra.mxu0 0
        %638 = vmatprep.subr.bf16.mxu0 0
        %639 = vmatpush1.bf16.msra.mxu0 0
        %640 = vmatprep.subr.bf16.mxu0 0
        %641 = vmatpush1.bf16.msra.mxu0 0
        %642 = vmatprep.subr.bf16.mxu0 0
        %643 = vmatpush1.bf16.msra.mxu0 0
        %644 = vmatprep.subr.bf16.mxu0 0
        %645 = vmatpush1.bf16.msra.mxu0 0
        %646 = vmatprep.mubr.bf16.mxu0 0
        %647 = vmatmul.mubr.bf16.gmra.mrb[0].mxu0 %v612
        %v648 = vpop.f32.mrb[0].mxu0
        %v649 = vadd.f32 0.0, %v648
        %v650 = vpop.f32.mrb[0].mxu0
        %v651 = vpop.f32.mrb[0].mxu0
        %v652 = vadd.f32 0.0, %v651
        %v653 = vpop.f32.mrb[0].mxu0
        %654 = vdwg.mxu0
        %v655 = vpack.c.bf16 %v652, %v649
        %s656 = scalar_lea.vmem [#allocation2], 8
        %v657 = vld [vmem:[%s656] sm:$0xf]
        %v658 = vld [vmem:[%s656 + $0x4] sm:$0xf]
        %v661 = vunpack.c.l.b16 %v657
        %v662 = vunpack.c.l.b16 %v658
        %v663 = vpack.c.b16 %v662, %v661
        %v665 = vsel %vm610, %v663, 0
        %667 = vmatprep.subr.bf16.mxu0 0
        %668 = vmatpush1.bf16.msra.mxu0 %v602
        %669 = vmatprep.subr.bf16.mxu0 0
        %670 = vmatpush1.bf16.msra.mxu0 0
        %671 = vmatprep.subr.bf16.mxu0 0
        %672 = vmatpush1.bf16.msra.mxu0 0
        %673 = vmatprep.subr.bf16.mxu0 0
        %674 = vmatpush1.bf16.msra.mxu0 0
        %675 = vmatprep.subr.bf16.mxu0 0
        %676 = vmatpush1.bf16.msra.mxu0 0
        %677 = vmatprep.subr.bf16.mxu0 0
        %678 = vmatpush1.bf16.msra.mxu0 0
        %679 = vmatprep.subr.bf16.mxu0 0
        %680 = vmatpush1.bf16.msra.mxu0 0
        %681 = vmatprep.subr.bf16.mxu0 0
        %682 = vmatpush1.bf16.msra.mxu0 0
        %683 = vmatprep.subr.bf16.mxu0 0
        %684 = vmatpush1.bf16.msra.mxu0 0
        %685 = vmatprep.subr.bf16.mxu0 0
        %686 = vmatpush1.bf16.msra.mxu0 0
        %687 = vmatprep.subr.bf16.mxu0 0
        %688 = vmatpush1.bf16.msra.mxu0 0
        %689 = vmatprep.subr.bf16.mxu0 0
        %690 = vmatpush1.bf16.msra.mxu0 0
        %691 = vmatprep.subr.bf16.mxu0 0
        %692 = vmatpush1.bf16.msra.mxu0 0
        %693 = vmatprep.subr.bf16.mxu0 0
        %694 = vmatpush1.bf16.msra.mxu0 0
        %695 = vmatprep.subr.bf16.mxu0 0
        %696 = vmatpush1.bf16.msra.mxu0 0
        %697 = vmatprep.subr.bf16.mxu0 0
        %698 = vmatpush1.bf16.msra.mxu0 0
        %699 = vmatprep.mubr.bf16.mxu0 0
        %700 = vmatmul.mubr.bf16.gmra.mrb[0].mxu0 %v665
        %v701 = vpop.f32.mrb[0].mxu0
        %v702 = vadd.f32 0.0, %v701
        %v703 = vpop.f32.mrb[0].mxu0
        %v704 = vpop.f32.mrb[0].mxu0
        %v705 = vadd.f32 0.0, %v704
        %v706 = vpop.f32.mrb[0].mxu0
        %707 = vdwg.mxu0
        %v708 = vpack.c.bf16 %v705, %v702
        %v709 = vld [vmem:[%s3] sm:$0xf]
        %v710 = vld [vmem:[%s3 + $0x4] sm:$0xf]
        %v711 = vld [vmem:[%s3 + $0x8] sm:$0xf]
        %v712 = vld [vmem:[%s3 + $0xc] sm:$0xf]
        %v713 = vld [vmem:[%s3 + $0x10] sm:$0xf]
        %v714 = vld [vmem:[%s3 + $0x14] sm:$0xf]
        %v715 = vld [vmem:[%s3 + $0x18] sm:$0xf]
        %v716 = vld [vmem:[%s3 + $0x1c] sm:$0xf]
        %s717 = scalar_lea.vmem %s3, 32
        %v718 = vld [vmem:[%s717] sm:$0xf]
        %v719 = vld [vmem:[%s717 + $0x4] sm:$0xf]
        %v720 = vld [vmem:[%s717 + $0x8] sm:$0xf]
        %v721 = vld [vmem:[%s717 + $0xc] sm:$0xf]
        %v722 = vld [vmem:[%s717 + $0x10] sm:$0xf]
        %v723 = vld [vmem:[%s717 + $0x14] sm:$0xf]
        %v724 = vld [vmem:[%s717 + $0x18] sm:$0xf]
        %v725 = vld [vmem:[%s717 + $0x1c] sm:$0xf]
        %v734 = vunpack.c.l.b16 %v718
        %v735 = vunpack.c.l.b16 %v719
        %v736 = vunpack.c.l.b16 %v720
        %v737 = vunpack.c.l.b16 %v721
        %v738 = vunpack.c.l.b16 %v722
        %v739 = vunpack.c.l.b16 %v723
        %v740 = vunpack.c.l.b16 %v724
        %v741 = vunpack.c.l.b16 %v725
        %v742 = vpack.c.b16 %v735, %v734
        %v743 = vpack.c.b16 %v737, %v736
        %v744 = vpack.c.b16 %v739, %v738
        %v745 = vpack.c.b16 %v741, %v740
        %vm750 = vcmask 523264
        %v752 = vsel %vm750, %v602, 0
        %754 = vmatprep.subr.bf16.mxu0 0
        %755 = vmatpush1.bf16.msra.mxu0 %v742
        %756 = vmatprep.subr.bf16.mxu0 0
        %757 = vmatpush1.bf16.msra.mxu0 %v743
        %758 = vmatprep.subr.bf16.mxu0 0
        %759 = vmatpush1.bf16.msra.mxu0 %v744
        %760 = vmatprep.subr.bf16.mxu0 0
        %761 = vmatpush1.bf16.msra.mxu0 %v745
        %762 = vmatprep.subr.bf16.mxu0 0
        %763 = vmatpush1.bf16.msra.mxu0 0
        %764 = vmatprep.subr.bf16.mxu0 0
        %765 = vmatpush1.bf16.msra.mxu0 0
        %766 = vmatprep.subr.bf16.mxu0 0
        %767 = vmatpush1.bf16.msra.mxu0 0
        %768 = vmatprep.subr.bf16.mxu0 0
        %769 = vmatpush1.bf16.msra.mxu0 0
        %770 = vmatprep.subr.bf16.mxu0 0
        %771 = vmatpush1.bf16.msra.mxu0 0
        %772 = vmatprep.subr.bf16.mxu0 0
        %773 = vmatpush1.bf16.msra.mxu0 0
        %774 = vmatprep.subr.bf16.mxu0 0
        %775 = vmatpush1.bf16.msra.mxu0 0
        %776 = vmatprep.subr.bf16.mxu0 0
        %777 = vmatpush1.bf16.msra.mxu0 0
        %778 = vmatprep.subr.bf16.mxu0 0
        %779 = vmatpush1.bf16.msra.mxu0 0
        %780 = vmatprep.subr.bf16.mxu0 0
        %781 = vmatpush1.bf16.msra.mxu0 0
        %782 = vmatprep.subr.bf16.mxu0 0
        %783 = vmatpush1.bf16.msra.mxu0 0
        %784 = vmatprep.subr.bf16.mxu0 0
        %785 = vmatpush1.bf16.msra.mxu0 0
        %786 = vmatprep.mubr.bf16.mxu0 0
        %787 = vmatmul.mubr.bf16.gmra.mrb[0].mxu0 %v752
        %v788 = vpop.f32.mrb[0].mxu0
        %v789 = vadd.f32 0.0, %v788
        %v790 = vpop.f32.mrb[0].mxu0
        %v791 = vpop.f32.mrb[0].mxu0
        %v792 = vadd.f32 0.0, %v791
        %v793 = vpop.f32.mrb[0].mxu0
        %794 = vdwg.mxu0
        %v803 = vunpack.c.l.b16 %v709
        %v804 = vunpack.c.l.b16 %v710
        %v805 = vunpack.c.l.b16 %v711
        %v806 = vunpack.c.l.b16 %v712
        %v807 = vunpack.c.l.b16 %v713
        %v808 = vunpack.c.l.b16 %v714
        %v809 = vunpack.c.l.b16 %v715
        %v810 = vunpack.c.l.b16 %v716
        %v811 = vpack.c.b16 %v804, %v803
        %v812 = vpack.c.b16 %v806, %v805
        %v813 = vpack.c.b16 %v808, %v807
        %v814 = vpack.c.b16 %v810, %v809
        %v820 = vsel %vm750, %v655, 0
        %822 = vmatprep.subr.bf16.mxu0 0
        %823 = vmatpush1.bf16.msra.mxu0 %v811
        %824 = vmatprep.subr.bf16.mxu0 0
        %825 = vmatpush1.bf16.msra.mxu0 %v812
        %826 = vmatprep.subr.bf16.mxu0 0
        %827 = vmatpush1.bf16.msra.mxu0 %v813
        %828 = vmatprep.subr.bf16.mxu0 0
        %829 = vmatpush1.bf16.msra.mxu0 %v814
        %830 = vmatprep.subr.bf16.mxu0 0
        %831 = vmatpush1.bf16.msra.mxu0 0
        %832 = vmatprep.subr.bf16.mxu0 0
        %833 = vmatpush1.bf16.msra.mxu0 0
        %834 = vmatprep.subr.bf16.mxu0 0
        %835 = vmatpush1.bf16.msra.mxu0 0
        %836 = vmatprep.subr.bf16.mxu0 0
        %837 = vmatpush1.bf16.msra.mxu0 0
        %838 = vmatprep.subr.bf16.mxu0 0
        %839 = vmatpush1.bf16.msra.mxu0 0
        %840 = vmatprep.subr.bf16.mxu0 0
        %841 = vmatpush1.bf16.msra.mxu0 0
        %842 = vmatprep.subr.bf16.mxu0 0
        %843 = vmatpush1.bf16.msra.mxu0 0
        %844 = vmatprep.subr.bf16.mxu0 0
        %845 = vmatpush1.bf16.msra.mxu0 0
        %846 = vmatprep.subr.bf16.mxu0 0
        %847 = vmatpush1.bf16.msra.mxu0 0
        %848 = vmatprep.subr.bf16.mxu0 0
        %849 = vmatpush1.bf16.msra.mxu0 0
        %850 = vmatprep.subr.bf16.mxu0 0
        %851 = vmatpush1.bf16.msra.mxu0 0
        %852 = vmatprep.subr.bf16.mxu0 0
        %853 = vmatpush1.bf16.msra.mxu0 0
        %854 = vmatprep.mubr.bf16.mxu0 0
        %855 = vmatmul.mubr.bf16.gmra.mrb[0].mxu0 %v820
        %v856 = vpop.f32.mrb[0].mxu0
        %v857 = vadd.f32 %v789, %v856
        %v858 = vpop.f32.mrb[0].mxu0
        %v859 = vpop.f32.mrb[0].mxu0
        %v860 = vadd.f32 %v792, %v859
        %v861 = vpop.f32.mrb[0].mxu0
        %862 = vdwg.mxu0
        %s863 = scalar_lea.vmem %s3, 64
        %v864 = vld [vmem:[%s863] sm:$0xf]
        %v865 = vld [vmem:[%s863 + $0x4] sm:$0xf]
        %v866 = vld [vmem:[%s863 + $0x8] sm:$0xf]
        %v867 = vld [vmem:[%s863 + $0xc] sm:$0xf]
        %v868 = vld [vmem:[%s863 + $0x10] sm:$0xf]
        %v869 = vld [vmem:[%s863 + $0x14] sm:$0xf]
        %v870 = vld [vmem:[%s863 + $0x18] sm:$0xf]
        %v871 = vld [vmem:[%s863 + $0x1c] sm:$0xf]
        %v880 = vunpack.c.l.b16 %v864
        %v881 = vunpack.c.l.b16 %v865
        %v882 = vunpack.c.l.b16 %v866
        %v883 = vunpack.c.l.b16 %v867
        %v884 = vunpack.c.l.b16 %v868
        %v885 = vunpack.c.l.b16 %v869
        %v886 = vunpack.c.l.b16 %v870
        %v887 = vunpack.c.l.b16 %v871
        %v888 = vpack.c.b16 %v881, %v880
        %v889 = vpack.c.b16 %v883, %v882
        %v890 = vpack.c.b16 %v885, %v884
        %v891 = vpack.c.b16 %v887, %v886
        %v897 = vsel %vm750, %v708, 0
        %899 = vmatprep.subr.bf16.mxu0 0
        %900 = vmatpush1.bf16.msra.mxu0 %v888
        %901 = vmatprep.subr.bf16.mxu0 0
        %902 = vmatpush1.bf16.msra.mxu0 %v889
        %903 = vmatprep.subr.bf16.mxu0 0
        %904 = vmatpush1.bf16.msra.mxu0 %v890
        %905 = vmatprep.subr.bf16.mxu0 0
        %906 = vmatpush1.bf16.msra.mxu0 %v891
        %907 = vmatprep.subr.bf16.mxu0 0
        %908 = vmatpush1.bf16.msra.mxu0 0
        %909 = vmatprep.subr.bf16.mxu0 0
        %910 = vmatpush1.bf16.msra.mxu0 0
        %911 = vmatprep.subr.bf16.mxu0 0
        %912 = vmatpush1.bf16.msra.mxu0 0
        %913 = vmatprep.subr.bf16.mxu0 0
        %914 = vmatpush1.bf16.msra.mxu0 0
        %915 = vmatprep.subr.bf16.mxu0 0
        %916 = vmatpush1.bf16.msra.mxu0 0
        %917 = vmatprep.subr.bf16.mxu0 0
        %918 = vmatpush1.bf16.msra.mxu0 0
        %919 = vmatprep.subr.bf16.mxu0 0
        %920 = vmatpush1.bf16.msra.mxu0 0
        %921 = vmatprep.subr.bf16.mxu0 0
        %922 = vmatpush1.bf16.msra.mxu0 0
        %923 = vmatprep.subr.bf16.mxu0 0
        %924 = vmatpush1.bf16.msra.mxu0 0
        %925 = vmatprep.subr.bf16.mxu0 0
        %926 = vmatpush1.bf16.msra.mxu0 0
        %927 = vmatprep.subr.bf16.mxu0 0
        %928 = vmatpush1.bf16.msra.mxu0 0
        %929 = vmatprep.subr.bf16.mxu0 0
        %930 = vmatpush1.bf16.msra.mxu0 0
        %931 = vmatprep.mubr.bf16.mxu0 0
        %932 = vmatmul.mubr.bf16.gmra.mrb[0].mxu0 %v897
        %v933 = vpop.f32.mrb[0].mxu0
        %v934 = vadd.f32 0.0, %v933
        %v935 = vpop.f32.mrb[0].mxu0
        %v936 = vpop.f32.mrb[0].mxu0
        %v937 = vadd.f32 0.0, %v936
        %v938 = vpop.f32.mrb[0].mxu0
        %939 = vdwg.mxu0
        %v940 = vadd.f32 %v857, %v934
        %v941 = vadd.f32 %v860, %v937
        %v942 = vld [vmem:[%s7] sm:$0x1]
        %v944 = vlaneseq
        %v945 = vshrl.u32 %v944, 7
        %v946 = vsub.s32 0, %v945
        %v947 = vrot.slane %v942, %v946
        %v949 = vmul.f32 %v940, %v947
        %v950 = vmul.f32 %v941, %v947
        %v951 = vld [vmem:[%s8] sm:$0x1]
        %v953 = vlaneseq
        %v954 = vshrl.u32 %v953, 7
        %v955 = vsub.s32 0, %v954
        %v956 = vrot.slane %v951, %v955
        %v958 = vadd.f32 %v949, %v956
        %v959 = vadd.f32 %v950, %v956
        %v960 = vmax.f32 %v958, 0.0
        %v961 = vmax.f32 %v959, 0.0
        %v962 = vpack.c.bf16 %v961, %v960
        %v963 = vld [vmem:[%s4] sm:$0xff]
        %v964 = vld [vmem:[%s4 + $0x8] sm:$0xff]
        %v965 = vld [vmem:[%s4 + $0x10] sm:$0xff]
        %v966 = vld [vmem:[%s4 + $0x18] sm:$0xff]
        %v967 = vld [vmem:[%s4 + $0x20] sm:$0xff]
        %v968 = vld [vmem:[%s4 + $0x28] sm:$0xff]
        %v969 = vld [vmem:[%s4 + $0x30] sm:$0xff]
        %v970 = vld [vmem:[%s4 + $0x38] sm:$0xff]
        %v979 = vunpack.c.l.b16 %v963
        %v980 = vunpack.c.h.b16 %v963
        %v981 = vunpack.c.l.b16 %v964
        %v982 = vunpack.c.h.b16 %v964
        %v983 = vunpack.c.l.b16 %v965
        %v984 = vunpack.c.h.b16 %v965
        %v985 = vunpack.c.l.b16 %v966
        %v986 = vunpack.c.h.b16 %v966
        %v987 = vunpack.c.l.b16 %v967
        %v988 = vunpack.c.h.b16 %v967
        %v989 = vunpack.c.l.b16 %v968
        %v990 = vunpack.c.h.b16 %v968
        %v991 = vunpack.c.l.b16 %v969
        %v992 = vunpack.c.h.b16 %v969
        %v993 = vunpack.c.l.b16 %v970
        %v994 = vunpack.c.h.b16 %v970
        %v995 = vpack.c.b16 %v981, %v979
        %v996 = vpack.c.b16 %v982, %v980
        %v997 = vpack.c.b16 %v985, %v983
        %v998 = vpack.c.b16 %v986, %v984
        %v999 = vpack.c.b16 %v989, %v987
        %v1000 = vpack.c.b16 %v990, %v988
        %v1001 = vpack.c.b16 %v993, %v991
        %v1002 = vpack.c.b16 %v994, %v992
        %v1012 = vsel %vm750, %v962, 0
        %1014 = vmatprep.subr.bf16.mxu0 %v996
        %1015 = vmatpush1.bf16.msra.mxu0 %v995
        %1016 = vmatprep.subr.bf16.mxu0 %v998
        %1017 = vmatpush1.bf16.msra.mxu0 %v997
        %1018 = vmatprep.subr.bf16.mxu0 %v1000
        %1019 = vmatpush1.bf16.msra.mxu0 %v999
        %1020 = vmatprep.subr.bf16.mxu0 %v1002
        %1021 = vmatpush1.bf16.msra.mxu0 %v1001
        %1022 = vmatprep.subr.bf16.mxu0 0
        %1023 = vmatpush1.bf16.msra.mxu0 0
        %1024 = vmatprep.subr.bf16.mxu0 0
        %1025 = vmatpush1.bf16.msra.mxu0 0
        %1026 = vmatprep.subr.bf16.mxu0 0
        %1027 = vmatpush1.bf16.msra.mxu0 0
        %1028 = vmatprep.subr.bf16.mxu0 0
        %1029 = vmatpush1.bf16.msra.mxu0 0
        %1030 = vmatprep.subr.bf16.mxu0 0
        %1031 = vmatpush1.bf16.msra.mxu0 0
        %1032 = vmatprep.subr.bf16.mxu0 0
        %1033 = vmatpush1.bf16.msra.mxu0 0
        %1034 = vmatprep.subr.bf16.mxu0 0
        %1035 = vmatpush1.bf16.msra.mxu0 0
        %1036 = vmatprep.subr.bf16.mxu0 0
        %1037 = vmatpush1.bf16.msra.mxu0 0
        %1038 = vmatprep.subr.bf16.mxu0 0
        %1039 = vmatpush1.bf16.msra.mxu0 0
        %1040 = vmatprep.subr.bf16.mxu0 0
        %1041 = vmatpush1.bf16.msra.mxu0 0
        %1042 = vmatprep.subr.bf16.mxu0 0
        %1043 = vmatpush1.bf16.msra.mxu0 0
        %1044 = vmatprep.subr.bf16.mxu0 0
        %1045 = vmatpush1.bf16.msra.mxu0 0
        %1046 = vmatprep.mubr.bf16.mxu0 0
        %1047 = vmatmul.mubr.bf16.gmra.mrb[0].mxu0 %v1012
        %v1048 = vpop.f32.mrb[0].mxu0
        %v1049 = vadd.f32 0.0, %v1048
        %v1050 = vpop.f32.mrb[0].mxu0
        %v1051 = vadd.f32 0.0, %v1050
        %v1052 = vpop.f32.mrb[0].mxu0
        %v1053 = vadd.f32 0.0, %v1052
        %v1054 = vpop.f32.mrb[0].mxu0
        %v1055 = vadd.f32 0.0, %v1054
        %1056 = vdwg.mxu0
        %v1057 = vld [vmem:[%s9] sm:$0x3]
        %v1059 = vlaneseq
        %v1060 = vshrl.u32 %v1059, 7
        %v1061 = vsub.s32 0, %v1060
        %v1062 = vrot.slane %v1057, %v1061
        %v1063 = vlaneseq
        %v1064 = vshrl.u32 %v1063, 7
        %v1065 = vsub.s32 1, %v1064
        %v1066 = vrot.slane %v1057, %v1065
        %v1069 = vmul.f32 %v1049, %v1062
        %v1070 = vmul.f32 %v1051, %v1066
        %v1071 = vmul.f32 %v1053, %v1062
        %v1072 = vmul.f32 %v1055, %v1066
        %v1073 = vld [vmem:[%s10] sm:$0x3]
        %v1075 = vlaneseq
        %v1076 = vshrl.u32 %v1075, 7
        %v1077 = vsub.s32 0, %v1076
        %v1078 = vrot.slane %v1073, %v1077
        %v1079 = vlaneseq
        %v1080 = vshrl.u32 %v1079, 7
        %v1081 = vsub.s32 1, %v1080
        %v1082 = vrot.slane %v1073, %v1081
        %v1085 = vadd.f32 %v1069, %v1078
        %v1086 = vadd.f32 %v1070, %v1082
        %v1087 = vadd.f32 %v1071, %v1078
        %v1088 = vadd.f32 %v1072, %v1082
        %v1089 = vunpack.c.l.bf16 %v401
        %v1090 = vunpack.c.h.bf16 %v401
        %v1091 = vunpack.c.l.bf16 %v402
        %v1092 = vunpack.c.h.bf16 %v402
        %v1093 = vadd.f32 %v1085, %v1089
        %v1094 = vadd.f32 %v1086, %v1090
        %v1095 = vadd.f32 %v1087, %v1091
        %v1096 = vadd.f32 %v1088, %v1092
        %v1097 = vmax.f32 %v1093, 0.0
        %v1098 = vmax.f32 %v1094, 0.0
        %v1099 = vmax.f32 %v1095, 0.0
        %v1100 = vmax.f32 %v1096, 0.0
        %v1101 = vpack.c.bf16 %v1099, %v1097
        %v1102 = vpack.c.bf16 %v1100, %v1098
        %v1105 = vunpack.c.l.b16 %v1101
        %v1106 = vunpack.c.l.b16 %v1102
        %v1107 = vunpack.c.h.b16 %v1101
        %v1108 = vunpack.c.h.b16 %v1102
        %v1109 = vpack.c.b16 %v1106, %v1105
        %v1110 = vpack.c.b16 %v1108, %v1107
        %1113 = vst [vmem:[%s394] sm:$0xff] %v1109
        %1114 = vst [vmem:[%s394 + $0x8] sm:$0xff] %v1110
        %s1115 = sand.u32 %s270, 1
        %s1116 = scalar_lea.sflag [#allocation4], %s1115
        %s1117 = sand.u32 %s270, 1
        %s1118 = smul.addr %s1117, 16
        %s1119 = scalar_lea.vmem [#allocation5], %s1118
        // Predicated region
        $region69: #{tpu_custom_call.1} parent=63 // pred_check
          %p1120 = pneg %p280
        $region70: #{tpu_custom_call.1} parent=63 // pred_check_branch
          %1122 = sbr.rel (%p1120) target = $region72
        $region71: #{tpu_custom_call.1} parent=63 // pred_region
          %s1124 = ssub.s32 256, 256
          %1125 = vsyncadd %s1116, %s1124
          %s1126 = smul.addr %s26, 4
          %s1127 = smul.addr %s1126, 64
          %s1128 = scalar_lea.hbm %s11, %s1127
          %s1129 = sshll.u32 %s1119, 4
          %s1130 = int_to_ptr.vmem [resolvable:$true] %s1129
          %1135 = dma.vmem_to_hbm [thread:$0]  %s1130, 256, %s1128, %s1116, 128, 128, 8
        $region72: #{tpu_custom_call.1} parent=63 // pred_fallthru
          _
      $region64: #{tpu_custom_call.1} parent=5 // pred_fallthru
        _
      %p1136 = scmp.le.s32.totalorder 2, %s21
      // Predicated region
      $region73: #{tpu_custom_call.1} parent=5 // pred_check
        %p1137 = pneg %p1136
      $region74: #{tpu_custom_call.1} parent=5 // pred_check_branch
        %1139 = sbr.rel (%p1137) target = $region76
      $region75: #{tpu_custom_call.1} parent=5 // pred_region
        %s1140 = ssub.s32 %s21, 2
        // Predicated region
        $region77: #{tpu_custom_call.1} parent=75 // pred_check
          %p1141 = pneg %p286
        $region78: #{tpu_custom_call.1} parent=75 // pred_check_branch
          %1143 = sbr.rel (%p1141) target = $region80
        $region79: #{tpu_custom_call.1} parent=75 // pred_region
          %s1144 = sand.u32 %s271, 1
          %s1145 = scalar_lea.sflag [#allocation4], %s1144
          %s1146 = sand.u32 %s271, 1
          %s1147 = smul.addr %s1146, 16
          %s1148 = scalar_lea.vmem [#allocation5], %s1147
          %1149 = dma.done %s1145, 256
        $region80: #{tpu_custom_call.1} parent=75 // pred_fallthru
          _
      $region76: #{tpu_custom_call.1} parent=5 // pred_fallthru
        _
    $region6: #{tpu_custom_call.1} parent=1 // loop_footer
      %s25 = sadd.s32 1, %s21
    $region7: #{tpu_custom_call.1} parent=1 // loop_footer_branch
      %20 = sbr.rel target = $region3
    $region8: #{tpu_custom_call.1} parent=1 // loop_exit
      _
    %1150 = vsyncpa [#allocation3], 1
    %s1151 = scalar_lea.sflag [#allocation3], 1
    %1152 = vsyncpa %s1151, 1
    %1153 = vsyncpa [#allocation4], 1
    %s1154 = scalar_lea.sflag [#allocation4], 1
    %1155 = vsyncpa %s1154, 1

</llo_original>
